<compile_context>
chip_gen: v5e
topology: v5e:2x2
jax: 0.10.0
libtpu: 0.0.40
codegen_flags: <defaults>
</compile_context>

<pallas_src>
import jax
import jax.numpy as jnp
from jax.experimental import pallas as pl
from jax.experimental.pallas import tpu as pltpu


def lstm_kernel(bound_ref, x_ref, wih_ref, whh_ref, b_ref, seq_ref,
                out_ref, gx_ref):
    T, Bb, E = x_ref.shape
    H = out_ref.shape[-1]

    # ---- Phase 1: input projection for the whole block (off the serial path).
    # (T, Bb, E) f32 -> (T*Bb, E) is layout-trivial since Bb % 8 == 0;
    # cast operands to bf16 for the MXU, accumulate in f32.
    x2 = x_ref[...].reshape(T * Bb, E).astype(jnp.bfloat16)
    gx_ref[...] = (
        jnp.dot(x2, wih_ref[...], preferred_element_type=jnp.float32)
        + b_ref[...])

    whh = whh_ref[...]          # (H, 4H) bf16, resident in VMEM
    seq = seq_ref[...]          # (Bb, 1) int32

    # ---- Phase 2: serial recurrence; only h @ W_hh^T + gate math per step.
    def step(t, carry):
        h, c, out = carry
        row = pl.multiple_of(t * Bb, Bb)
        gates = (gx_ref[pl.ds(row, Bb), :]
                 + jnp.dot(h.astype(jnp.bfloat16), whh,
                           preferred_element_type=jnp.float32))
        # gate order [i, f, o, g] (reordered in the wrapper):
        # one sigmoid over a contiguous (Bb, 3H) slice, one tanh over (Bb, H).
        sig = jax.nn.sigmoid(gates[:, :3 * H])
        i_g = sig[:, 0 * H:1 * H]
        f_g = sig[:, 1 * H:2 * H]
        o_g = sig[:, 2 * H:3 * H]
        g_g = jnp.tanh(gates[:, 3 * H:])
        c_new = f_g * c + i_g * g_g
        h_new = o_g * jnp.tanh(c_new)
        # Fused torch.gather: latch h at t == seq_len - 1.
        out_new = jnp.where(seq == t + 1, h_new, out)
        return h_new, c_new, out_new

    zeros = jnp.zeros((Bb, H), jnp.float32)
    t_stop = bound_ref[pl.program_id(0)]      # per-block max(seq_len), <= T
    _, _, out = jax.lax.fori_loop(0, t_stop, step, (zeros, zeros, zeros))
    out_ref[...] = out                        # single final (Bb, H) store


def toy_rnn_lstm_forward(text, seq_len, params, *, block_b=None):
    """text: (B, T, E) float32, seq_len: (B,) int, returns (B, H) float32."""
    B, T, E = text.shape
    H = params["w_hh"].shape[1]

    # Pad batch to a multiple of 8 (sublane); block the batch for the grid.
    B_blk = block_b if block_b is not None else min(128, ((B + 7) // 8) * 8)
    B_pad = ((B + B_blk - 1) // B_blk) * B_blk
    nb = B_pad // B_blk
    pad = B_pad - B

    text_p = jnp.pad(text.astype(jnp.float32), ((0, pad), (0, 0), (0, 0)))
    seq_p = jnp.pad(seq_len.astype(jnp.int32), ((0, pad),), constant_values=0)

    x_tbe = jnp.transpose(text_p, (1, 0, 2))                  # (T, B_pad, E)

    # Reorder PyTorch gate rows [i, f, g, o] -> [i, f, o, g].
    def _reorder(w):
        i, f, g, o = jnp.split(w, 4, axis=0)
        return jnp.concatenate([i, f, o, g], axis=0)

    wih_t = _reorder(params["w_ih"]).T.astype(jnp.bfloat16)    # (E, 4H)
    whh_t = _reorder(params["w_hh"]).T.astype(jnp.bfloat16)    # (H, 4H)
    bias = _reorder(params["b_ih"] + params["b_hh"]).reshape(1, 4 * H)
    bias = bias.astype(jnp.float32)

    seq2 = seq_p.reshape(B_pad, 1)
    # Per-block loop bound = max(seq_len) in the block, clamped to [0, T].
    block_bound = jnp.clip(
        jnp.max(seq_p.reshape(nb, B_blk), axis=1), 0, T).astype(jnp.int32)

    out = pl.pallas_call(
        lstm_kernel,
        out_shape=jax.ShapeDtypeStruct((B_pad, H), jnp.float32),
        grid_spec=pltpu.PrefetchScalarGridSpec(
            num_scalar_prefetch=1,                       # block_bound -> SMEM
            grid=(nb,),                                  # parallel batch blocks
            in_specs=[
                pl.BlockSpec((T, B_blk, E), lambda b, bb: (0, b, 0)),   # x slab
                pl.BlockSpec((E, 4 * H), lambda b, bb: (0, 0)),         # W_ih^T
                pl.BlockSpec((H, 4 * H), lambda b, bb: (0, 0)),         # W_hh^T
                pl.BlockSpec((1, 4 * H), lambda b, bb: (0, 0)),         # bias
                pl.BlockSpec((B_blk, 1), lambda b, bb: (b, 0)),         # seq_len
            ],
            out_specs=pl.BlockSpec((B_blk, H), lambda b, bb: (b, 0)),
            scratch_shapes=[
                pltpu.VMEM((T * B_blk, 4 * H), jnp.float32),  # gates_x slab
            ],
        ),
        compiler_params=pltpu.CompilerParams(
            dimension_semantics=("parallel",),   # batch blocks are independent
            # Explicit, safe on all of v5e/v6e/v7x; re-derive for production
            # E/H against v7x's 64 MiB physical VMEM.
            vmem_limit_bytes=32 * 1024 * 1024,
        ),
    )(block_bound, x_tbe, wih_t, whh_t, bias, seq2)

    return out[:B]


def lstm_reference(text, seq_len, params):
    """Pure-JAX f32 reference (PyTorch gate order) for correctness checking."""
    B, T, E = text.shape
    w_ih, w_hh = params["w_ih"], params["w_hh"]
    b = params["b_ih"] + params["b_hh"]

    def step(carry, x_t):
        h, c = carry
        gates = x_t @ w_ih.T + h @ w_hh.T + b
        i_g, f_g, g_g, o_g = jnp.split(gates, 4, axis=-1)
        i_g = jax.nn.sigmoid(i_g)
        f_g = jax.nn.sigmoid(f_g)
        g_g = jnp.tanh(g_g)
        o_g = jax.nn.sigmoid(o_g)
        c = f_g * c + i_g * g_g
        h = o_g * jnp.tanh(c)
        return (h, c), h

    H = params["w_hh"].shape[1]
    h0 = jnp.zeros((B, H), jnp.float32)
    c0 = jnp.zeros((B, H), jnp.float32)
    _, hs = jax.lax.scan(step, (h0, c0), jnp.transpose(text, (1, 0, 2)))
    hs = jnp.transpose(hs, (1, 0, 2))                       # (B, T, H)
    idx = seq_len.astype(jnp.int32) - 1
    return hs[jnp.arange(B), idx]


def init_params(key, embedding_length, hidden_size):
    # nn.LSTM default init: U(-1/sqrt(H), 1/sqrt(H)), gate order [i, f, g, o].
    k = 1.0 / jnp.sqrt(hidden_size)
    k1, k2, k3, k4 = jax.random.split(key, 4)
    return {
        "w_ih": jax.random.uniform(k1, (4 * hidden_size, embedding_length),
                                   jnp.float32, -k, k),
        "w_hh": jax.random.uniform(k2, (4 * hidden_size, hidden_size),
                                   jnp.float32, -k, k),
        "b_ih": jax.random.uniform(k3, (4 * hidden_size,), jnp.float32, -k, k),
        "b_hh": jax.random.uniform(k4, (4 * hidden_size,), jnp.float32, -k, k),
    }


if __name__ == "__main__":
    B, T, E, H = 2, 8, 64, 32

    key = jax.random.PRNGKey(0)
    k_param, k_text = jax.random.split(key)

    params = init_params(k_param, E, H)
    text = jax.random.normal(k_text, (B, T, E), jnp.float32)
    seq_len = jnp.array([5, 8], dtype=jnp.int32)   # per-example word counts

    out = toy_rnn_lstm_forward(text, seq_len, params)
    out = jax.block_until_ready(out)

    ref = lstm_reference(text, seq_len, params)
    assert out.shape == (B, H)
    err = float(jnp.max(jnp.abs(out - ref)))
    # bf16 MXU operands vs f32 reference -> loose tolerance.
    assert err < 2e-2, f"max abs err {err}"

    print("KERNEL_OK")
</pallas_src>

<mosaic_0001>
module attributes {stable_mosaic.version = 11 : i64} {
  func.func @lstm_kernel(%arg0: i32, %arg1: memref<1xi32, #tpu.memory_space<smem>>, %arg2: memref<8x8x64xf32, #tpu.memory_space<vmem>>, %arg3: memref<64x128xbf16, #tpu.memory_space<vmem>>, %arg4: memref<32x128xbf16, #tpu.memory_space<vmem>>, %arg5: memref<1x128xf32, #tpu.memory_space<vmem>>, %arg6: memref<8x1xi32, #tpu.memory_space<vmem>>, %arg7: memref<8x32xf32, #tpu.memory_space<vmem>>, %arg8: memref<64x128xf32, #tpu.memory_space<vmem>>) attributes {dimension_semantics = [#tpu.dimension_semantics<parallel>], iteration_bounds = array<i64: 1>, scalar_prefetch = 1 : i64, scratch_operands = 1 : i64, tpu.core_type = #tpu.core_type<tc>, window_params = [{transform_indices = @transform_0, window_bounds = array<i64: 8, 8, 64>}, {pipeline_mode = #tpu.pipeline_mode<synchronous>, transform_indices = @transform_1, window_bounds = array<i64: 64, 128>}, {pipeline_mode = #tpu.pipeline_mode<synchronous>, transform_indices = @transform_2, window_bounds = array<i64: 32, 128>}, {pipeline_mode = #tpu.pipeline_mode<synchronous>, transform_indices = @transform_3, window_bounds = array<i64: 1, 128>}, {transform_indices = @transform_4, window_bounds = array<i64: 8, 1>}, {transform_indices = @transform_5, window_bounds = array<i64: 8, 32>}]} {
    %c0 = arith.constant 0 : index
    %c0_0 = arith.constant 0 : index
    %c0_1 = arith.constant 0 : index
    %0 = vector.load %arg2[%c0, %c0_0, %c0_1] : memref<8x8x64xf32, #tpu.memory_space<vmem>>, vector<8x8x64xf32>
    %1 = vector.shape_cast %0 : vector<8x8x64xf32> to vector<64x64xf32>
    %2 = arith.truncf %1 : vector<64x64xf32> to vector<64x64xbf16>
    %c0_2 = arith.constant 0 : index
    %c0_3 = arith.constant 0 : index
    %3 = vector.load %arg3[%c0_2, %c0_3] : memref<64x128xbf16, #tpu.memory_space<vmem>>, vector<64x128xbf16>
    %cst = arith.constant dense<0.000000e+00> : vector<64x128xf32>
    %4 = tpu.matmul %2, %3, %cst {dimension_numbers = #tpu.dot_dimension_numbers<[1], [0], [0], [1], [0, 0, 1, 1], [], []>} : vector<64x64xbf16>, vector<64x128xbf16>, vector<64x128xf32> -> vector<64x128xf32>
    %c0_4 = arith.constant 0 : index
    %c0_5 = arith.constant 0 : index
    %5 = vector.load %arg5[%c0_4, %c0_5] : memref<1x128xf32, #tpu.memory_space<vmem>>, vector<1x128xf32>
    %6 = vector.broadcast %5 : vector<1x128xf32> to vector<64x128xf32>
    %7 = arith.addf %4, %6 : vector<64x128xf32>
    %c0_6 = arith.constant 0 : index
    %c0_7 = arith.constant 0 : index
    %8 = vector.load %arg8[%c0_6, %c0_7] : memref<64x128xf32, #tpu.memory_space<vmem>>, vector<64x128xf32>
    tpu.vector_store %arg8[%c0_6, %c0_7], %7 {strides = array<i32>} : memref<64x128xf32, #tpu.memory_space<vmem>>, vector<64x128xf32>,
    %c0_8 = arith.constant 0 : index
    %c0_9 = arith.constant 0 : index
    %9 = vector.load %arg4[%c0_8, %c0_9] : memref<32x128xbf16, #tpu.memory_space<vmem>>, vector<32x128xbf16>
    %c0_10 = arith.constant 0 : index
    %c0_11 = arith.constant 0 : index
    %10 = vector.load %arg6[%c0_10, %c0_11] : memref<8x1xi32, #tpu.memory_space<vmem>>, vector<8x1xi32>
    %cst_12 = arith.constant 0.000000e+00 : f32
    %11 = vector.broadcast %cst_12 : f32 to vector<8x32xf32>
    %12 = arith.index_cast %arg0 : i32 to index
    %13 = memref.load %arg1[%12] : memref<1xi32, #tpu.memory_space<smem>>
    %c0_i32 = arith.constant 0 : i32
    %14 = arith.subi %13, %c0_i32 : i32
    %15 = arith.addi %c0_i32, %14 : i32
    %c1_i32 = arith.constant 1 : i32
    %16:3 = scf.for %arg9 = %c0_i32 to %15 step %c1_i32 iter_args(%arg10 = %11, %arg11 = %11, %arg12 = %11) -> (vector<8x32xf32>, vector<8x32xf32>, vector<8x32xf32>)  : i32 {
      %c8_i32 = arith.constant 8 : i32
      %18 = arith.muli %arg9, %c8_i32 : i32
      %19 = tpu.assume_multiple %18, 8 : i32
      %20 = arith.index_cast %19 : i32 to index
      %c0_15 = arith.constant 0 : index
      %21 = vector.load %arg8[%20, %c0_15] : memref<64x128xf32, #tpu.memory_space<vmem>>, vector<8x128xf32>
      %22 = arith.truncf %arg10 : vector<8x32xf32> to vector<8x32xbf16>
      %cst_16 = arith.constant dense<0.000000e+00> : vector<8x128xf32>
      %23 = tpu.matmul %22, %9, %cst_16 {dimension_numbers = #tpu.dot_dimension_numbers<[1], [0], [0], [1], [0, 0, 1, 1], [], []>} : vector<8x32xbf16>, vector<32x128xbf16>, vector<8x128xf32> -> vector<8x128xf32>
      %24 = arith.addf %21, %23 : vector<8x128xf32>
      %25 = vector.extract_strided_slice %24 {offsets = [0, 0], sizes = [8, 96], strides = [1, 1]} : vector<8x128xf32> to vector<8x96xf32>
      %26 = arith.negf %25 : vector<8x96xf32>
      %27 = math.exp %26 : vector<8x96xf32>
      %cst_17 = arith.constant 1.000000e+00 : f32
      %28 = vector.broadcast %cst_17 : f32 to vector<8x96xf32>
      %29 = arith.addf %28, %27 : vector<8x96xf32>
      %30 = arith.divf %28, %29 : vector<8x96xf32>
      %31 = vector.extract_strided_slice %30 {offsets = [0, 0], sizes = [8, 32], strides = [1, 1]} : vector<8x96xf32> to vector<8x32xf32>
      %32 = vector.extract_strided_slice %30 {offsets = [0, 32], sizes = [8, 32], strides = [1, 1]} : vector<8x96xf32> to vector<8x32xf32>
      %33 = vector.extract_strided_slice %30 {offsets = [0, 64], sizes = [8, 32], strides = [1, 1]} : vector<8x96xf32> to vector<8x32xf32>
      %34 = vector.extract_strided_slice %24 {offsets = [0, 96], sizes = [8, 32], strides = [1, 1]} : vector<8x128xf32> to vector<8x32xf32>
      %35 = math.tanh %34 : vector<8x32xf32>
      %36 = arith.mulf %32, %arg11 : vector<8x32xf32>
      %37 = arith.mulf %31, %35 : vector<8x32xf32>
      %38 = arith.addf %36, %37 : vector<8x32xf32>
      %39 = math.tanh %38 : vector<8x32xf32>
      %40 = arith.mulf %33, %39 : vector<8x32xf32>
      %c1_i32_18 = arith.constant 1 : i32
      %41 = arith.addi %arg9, %c1_i32_18 : i32
      %42 = vector.broadcast %41 : i32 to vector<8x1xi32>
      %43 = arith.cmpi eq, %10, %42 : vector<8x1xi32>
      %44 = vector.shape_cast %43 : vector<8x1xi1> to vector<8x1xi1>
      %45 = vector.broadcast %44 : vector<8x1xi1> to vector<8x32xi1>
      %46 = arith.select %45, %40, %arg12 : vector<8x32xi1>, vector<8x32xf32>
      scf.yield %40, %38, %46 : vector<8x32xf32>, vector<8x32xf32>, vector<8x32xf32>
    }
    %c0_13 = arith.constant 0 : index
    %c0_14 = arith.constant 0 : index
    %17 = vector.load %arg7[%c0_13, %c0_14] : memref<8x32xf32, #tpu.memory_space<vmem>>, vector<8x32xf32>
    tpu.vector_store %arg7[%c0_13, %c0_14], %16#2 {strides = array<i32>} : memref<8x32xf32, #tpu.memory_space<vmem>>, vector<8x32xf32>,
    return
  }
  func.func @transform_0(%arg0: i32, %arg1: memref<1xi32, #tpu.memory_space<smem>>) -> (i32, i32, i32) {
    %c0_i32 = arith.constant 0 : i32
    %c0_i32_0 = arith.constant 0 : i32
    %c0_i32_1 = arith.constant 0 : i32
    return %c0_i32, %arg0, %c0_i32_0 : i32, i32, i32
  }
  func.func @transform_1(%arg0: i32, %arg1: memref<1xi32, #tpu.memory_space<smem>>) -> (i32, i32) {
    %c0_i32 = arith.constant 0 : i32
    %c0_i32_0 = arith.constant 0 : i32
    %c0_i32_1 = arith.constant 0 : i32
    return %c0_i32, %c0_i32_0 : i32, i32
  }
  func.func @transform_2(%arg0: i32, %arg1: memref<1xi32, #tpu.memory_space<smem>>) -> (i32, i32) {
    %c0_i32 = arith.constant 0 : i32
    %c0_i32_0 = arith.constant 0 : i32
    %c0_i32_1 = arith.constant 0 : i32
    return %c0_i32, %c0_i32_0 : i32, i32
  }
  func.func @transform_3(%arg0: i32, %arg1: memref<1xi32, #tpu.memory_space<smem>>) -> (i32, i32) {
    %c0_i32 = arith.constant 0 : i32
    %c0_i32_0 = arith.constant 0 : i32
    %c0_i32_1 = arith.constant 0 : i32
    return %c0_i32, %c0_i32_0 : i32, i32
  }
  func.func @transform_4(%arg0: i32, %arg1: memref<1xi32, #tpu.memory_space<smem>>) -> (i32, i32) {
    %c0_i32 = arith.constant 0 : i32
    %c0_i32_0 = arith.constant 0 : i32
    return %arg0, %c0_i32 : i32, i32
  }
  func.func @transform_5(%arg0: i32, %arg1: memref<1xi32, #tpu.memory_space<smem>>) -> (i32, i32) {
    %c0_i32 = arith.constant 0 : i32
    %c0_i32_0 = arith.constant 0 : i32
    return %arg0, %c0_i32 : i32, i32
  }
}

</mosaic_0001>

<llo_original>
// kernel: tpu_custom_call.1
$region0: #{tpu_custom_call.1}
  #allocation0 [shape = 'u32[]', space=smem, size = 0x4, offset = 0x4, fixed_abs, tag = 'smem constant byte address 0x4 - core index']
  #allocation1 [shape = 'u32[72,128]{1,0:T(1,128)}', space=vmem, size = 0x9000, scoped, tag = 'internal scratch']
  #allocation2 [shape = 'f32[64,128]{1,0:T(8,128)}', space=vmem, size = 0x8000, scoped, tag = 'scratch operand']
  #allocation3 [shape = 's32[1]{0}', space=sflag, size = 0x4, scoped, tag = 'scoped memory for tpu_custom_call.1']
  #allocation4 [shape = 's32[1]{0:T(128)S(6)}', space=smem, size = 0x200, scoped, tag = 'prefetched SMEM operand 0']
  %s0 = inlined_call_operand.<no memory space> [shape: s32[1], index: 0, kind: input, shape index: {}]
  %s1 = inlined_call_operand.hbm [shape: f32[8,8,64], index: 1, kind: input, shape index: {}]
  %s2 = inlined_call_operand.hbm [shape: bf16[64,128], index: 2, kind: input, shape index: {}]
  %s3 = inlined_call_operand.hbm [shape: bf16[32,128], index: 3, kind: input, shape index: {}]
  %s4 = inlined_call_operand.vmem [shape: f32[1,128], index: 4, kind: input, shape index: {}]
  %s5 = inlined_call_operand.vmem [shape: s32[8,1], index: 5, kind: input, shape index: {}]
  %s6 = inlined_call_operand.hbm [shape: f32[8,32], index: 6, kind: output, shape index: {}]
  %s7 = sld [smem:[#allocation0]]
  $region49: #{tpu_custom_call.1} parent=0
    _
  %s9 = ssub.s32 1, %s7
  %s10 = scalar_select 0, %s9, %s7
  %11 = sst [smem:[#allocation4]] %s0
  $region1: #{tpu_custom_call.1} parent=0
    #allocation5 [shape = 'u8[32768]{0}', space=vmem, size = 0x8000, scoped, tag = 'input window, operand 1, single buffered']
    #allocation6 [shape = 's32[1]{0}', space=sflag, size = 0x4, scoped, tag = 'scoped memory for tpu_custom_call.1']
    #allocation7 [shape = 's32[1]{0}', space=sflag, size = 0x4, scoped, tag = 'scoped memory for tpu_custom_call.1']
    #allocation8 [shape = 'u8[16384]{0}', space=vmem, size = 0x4000, scoped, tag = 'input window, operand 2, single buffered']
    #allocation9 [shape = 's32[1]{0}', space=sflag, size = 0x4, scoped, tag = 'scoped memory for tpu_custom_call.1']
    #allocation10 [shape = 'u8[8192]{0}', space=vmem, size = 0x2000, scoped, tag = 'input window, operand 3, single buffered']
    #allocation11 [shape = 'u8[4096]{0}', space=vmem, size = 0x1000, scoped, tag = 'output window, operand 0, single buffered']
    %12 = vsyncpa [#allocation6], 0
    %13 = vsyncpa [#allocation9], 0
    %14 = vsyncpa [#allocation7], 0
    // Predicated region
    $region2: #{tpu_custom_call.1} parent=1 // pred_check
      _
    $region3: #{tpu_custom_call.1} parent=1 // pred_check_branch
      %16 = sbr.rel (0) target = $region5
    $region4: #{tpu_custom_call.1} parent=1 // pred_region
      %18 = vsyncadd [#allocation6], 0
      %s19 = sshll.u32 %s1, 4
      %s20 = int_to_ptr.hbm [resolvable:$true] %s19
      %s21 = sshll.u32 [#allocation5], 4
      %s22 = int_to_ptr.vmem [resolvable:$true] %s21
      %27 = dma.hbm_to_vmem [thread:$0]  %s20, 1024, %s22, [#allocation6], 128, 128, 8
    $region5: #{tpu_custom_call.1} parent=1 // pred_fallthru
      _
    // Predicated region
    $region6: #{tpu_custom_call.1} parent=1 // pred_check
      _
    $region7: #{tpu_custom_call.1} parent=1 // pred_check_branch
      %29 = sbr.rel (0) target = $region9
    $region8: #{tpu_custom_call.1} parent=1 // pred_region
      %31 = vsyncadd [#allocation9], 0
      %s32 = sshll.u32 %s2, 4
      %s33 = int_to_ptr.hbm [resolvable:$true] %s32
      %s34 = sshll.u32 [#allocation8], 4
      %s35 = int_to_ptr.vmem [resolvable:$true] %s34
      %40 = dma.hbm_to_vmem [thread:$0]  %s33, 512, %s35, [#allocation9], 64, 64, 4
    $region9: #{tpu_custom_call.1} parent=1 // pred_fallthru
      _
    // Predicated region
    $region10: #{tpu_custom_call.1} parent=1 // pred_check
      _
    $region11: #{tpu_custom_call.1} parent=1 // pred_check_branch
      %42 = sbr.rel (0) target = $region13
    $region12: #{tpu_custom_call.1} parent=1 // pred_region
      %44 = vsyncadd [#allocation9], 0
      %s45 = sshll.u32 %s3, 4
      %s46 = int_to_ptr.hbm [resolvable:$true] %s45
      %s47 = sshll.u32 [#allocation10], 4
      %s48 = int_to_ptr.vmem [resolvable:$true] %s47
      %53 = dma.hbm_to_vmem [thread:$0]  %s46, 256, %s48, [#allocation9], 64, 64, 4
    $region13: #{tpu_custom_call.1} parent=1 // pred_fallthru
      _
    // Predicated region
    $region14: #{tpu_custom_call.1} parent=1 // pred_check
      _
    $region15: #{tpu_custom_call.1} parent=1 // pred_check_branch
      %55 = sbr.rel (0) target = $region17
    $region16: #{tpu_custom_call.1} parent=1 // pred_region
      _
    $region17: #{tpu_custom_call.1} parent=1 // pred_fallthru
      _
    // Predicated region
    $region18: #{tpu_custom_call.1} parent=1 // pred_check
      _
    $region19: #{tpu_custom_call.1} parent=1 // pred_check_branch
      %57 = sbr.rel (0) target = $region21
    $region20: #{tpu_custom_call.1} parent=1 // pred_region
      _
    $region21: #{tpu_custom_call.1} parent=1 // pred_fallthru
      _
    // Predicated region
    $region22: #{tpu_custom_call.1} parent=1 // pred_check
      _
    $region23: #{tpu_custom_call.1} parent=1 // pred_check_branch
      %59 = sbr.rel (0) target = $region25
    $region24: #{tpu_custom_call.1} parent=1 // pred_region
      %61 = dma.done [#allocation6], 1024
    $region25: #{tpu_custom_call.1} parent=1 // pred_fallthru
      _
    // Predicated region
    $region26: #{tpu_custom_call.1} parent=1 // pred_check
      _
    $region27: #{tpu_custom_call.1} parent=1 // pred_check_branch
      %63 = sbr.rel (0) target = $region29
    $region28: #{tpu_custom_call.1} parent=1 // pred_region
      %65 = dma.done [#allocation9], 512
    $region29: #{tpu_custom_call.1} parent=1 // pred_fallthru
      _
    // Predicated region
    $region30: #{tpu_custom_call.1} parent=1 // pred_check
      _
    $region31: #{tpu_custom_call.1} parent=1 // pred_check_branch
      %67 = sbr.rel (0) target = $region33
    $region32: #{tpu_custom_call.1} parent=1 // pred_region
      %69 = dma.done [#allocation9], 256
    $region33: #{tpu_custom_call.1} parent=1 // pred_fallthru
      _
    %v71 = vld [vmem:[#allocation5] sm:$0xff]
    %v72 = vld [vmem:[#allocation5 + $0x8] sm:$0xff]
    %v73 = vld [vmem:[#allocation5 + $0x10] sm:$0xff]
    %v74 = vld [vmem:[#allocation5 + $0x18] sm:$0xff]
    %v75 = vld [vmem:[#allocation5 + $0x20] sm:$0xff]
    %v76 = vld [vmem:[#allocation5 + $0x28] sm:$0xff]
    %v77 = vld [vmem:[#allocation5 + $0x30] sm:$0xff]
    %v78 = vld [vmem:[#allocation5 + $0x38] sm:$0xff]
    %v79 = vpack.c.bf16 %v72, %v71
    %v80 = vpack.c.bf16 %v74, %v73
    %v81 = vpack.c.bf16 %v76, %v75
    %v82 = vpack.c.bf16 %v78, %v77
    %v83 = vld [vmem:[#allocation8] sm:$0xf]
    %v84 = vld [vmem:[#allocation8 + $0x4] sm:$0xf]
    %v85 = vld [vmem:[#allocation8 + $0x8] sm:$0xf]
    %v86 = vld [vmem:[#allocation8 + $0xc] sm:$0xf]
    %v87 = vld [vmem:[#allocation8 + $0x10] sm:$0xf]
    %v88 = vld [vmem:[#allocation8 + $0x14] sm:$0xf]
    %v89 = vld [vmem:[#allocation8 + $0x18] sm:$0xf]
    %v90 = vld [vmem:[#allocation8 + $0x1c] sm:$0xf]
    %v91 = vld [vmem:[%s4] sm:$0x1]
    %v93 = vperm.slane %v91, 0
    %v103 = vunpack.c.l.b16 %v83
    %v104 = vunpack.c.l.b16 %v84
    %v105 = vunpack.c.l.b16 %v85
    %v106 = vunpack.c.l.b16 %v86
    %v107 = vunpack.c.l.b16 %v87
    %v108 = vunpack.c.l.b16 %v88
    %v109 = vunpack.c.l.b16 %v89
    %v110 = vunpack.c.l.b16 %v90
    %v111 = vpack.c.b16 %v104, %v103
    %v112 = vpack.c.b16 %v106, %v105
    %v113 = vpack.c.b16 %v108, %v107
    %v114 = vpack.c.b16 %v110, %v109
    %vm119 = vcmask 523264
    %v121 = vsel %vm119, %v79, 0
    %v124 = vsel %vm119, %v80, 0
    %v127 = vsel %vm119, %v81, 0
    %v130 = vsel %vm119, %v82, 0
    %132 = vmatpush.bf16.msra.mxu0 0
    %133 = vmatpush.bf16.msra.mxu0 0
    %134 = vmatpush.bf16.msra.mxu0 0
    %135 = vmatpush.bf16.msra.mxu0 0
    %136 = vmatpush.bf16.msra.mxu0 %v114
    %137 = vmatpush.bf16.msra.mxu0 %v113
    %138 = vmatpush.bf16.msra.mxu0 %v112
    %139 = vmatpush.bf16.msra.mxu0 %v111
    %140 = vmatmul.bf16.gmra.mxu0 %v121
    %v141 = vpop.f32.mrf.mxu0
    %v142 = vadd.f32 %v93, %v141
    %v143 = vpop.f32.mrf.mxu0
    %v144 = vadd.f32 %v93, %v143
    %145 = vmatmul.bf16.gmra.mxu0 %v124
    %v146 = vpop.f32.mrf.mxu0
    %v147 = vadd.f32 %v93, %v146
    %v148 = vpop.f32.mrf.mxu0
    %v149 = vadd.f32 %v93, %v148
    %150 = vmatmul.bf16.gmra.mxu0 %v127
    %v151 = vpop.f32.mrf.mxu0
    %v152 = vadd.f32 %v93, %v151
    %v153 = vpop.f32.mrf.mxu0
    %v154 = vadd.f32 %v93, %v153
    %155 = vmatmul.bf16.gmra.mxu0 %v130
    %v156 = vpop.f32.mrf.mxu0
    %v157 = vadd.f32 %v93, %v156
    %v158 = vpop.f32.mrf.mxu0
    %v159 = vadd.f32 %v93, %v158
    %160 = vdwg.mxu0
    %161 = vst [vmem:[#allocation2] sm:$0xff] %v142
    %162 = vst [vmem:[#allocation2 + $0x8] sm:$0xff] %v144
    %163 = vst [vmem:[#allocation2 + $0x10] sm:$0xff] %v147
    %164 = vst [vmem:[#allocation2 + $0x18] sm:$0xff] %v149
    %165 = vst [vmem:[#allocation2 + $0x20] sm:$0xff] %v152
    %166 = vst [vmem:[#allocation2 + $0x28] sm:$0xff] %v154
    %167 = vst [vmem:[#allocation2 + $0x30] sm:$0xff] %v157
    %168 = vst [vmem:[#allocation2 + $0x38] sm:$0xff] %v159
    %v169 = vld [vmem:[#allocation10] sm:$0xf]
    %v170 = vld [vmem:[#allocation10 + $0x4] sm:$0xf]
    %v171 = vld [vmem:[#allocation10 + $0x8] sm:$0xf]
    %v172 = vld [vmem:[#allocation10 + $0xc] sm:$0xf]
    %v173 = vld [vmem:[%s5] sm:$0xff]
    %s174 = sld [smem:[#allocation4]]
    // While loop
    $region34: #{tpu_custom_call.1} parent=1 // loop_pre_header
      _
    $region35: #{tpu_custom_call.1} parent=1 // loop_header
      %s176 = sphi 0, %s178
      %p177 = scmp.ge.s32.totalorder %s176, %s174
      %v181 = vphi 0.0, %v257
      %v182 = vphi 0.0, %v251
      %v183 = vphi 0.0, %v266
    $region36: #{tpu_custom_call.1} parent=1 // loop_header_branch
      %180 = sbr.rel (%p177) target = $region40
    $region37: #{tpu_custom_call.1} parent=1 // loop_body
      %s184 = smul.u32 %s176, 8
      %s185 = scalar_lea.vmem [#allocation2], %s184
      %v186 = vld [vmem:[%s185] sm:$0xff]
      %v187 = vpack.c.bf16 %v181, %v181
      %189 = vrot.lane.b32.xlu0 %v187, 64
      %v190 = vpop.permute.xlu0 %189
      %v195 = vunpack.c.l.b16 %v169
      %v196 = vunpack.c.l.b16 %v170
      %v197 = vunpack.c.l.b16 %v171
      %v198 = vunpack.c.l.b16 %v172
      %v199 = vpack.c.b16 %v196, %v195
      %v200 = vpack.c.b16 %v198, %v197
      %vm203 = vcmask 261120
      %v205 = vsel %vm203, %v190, 0
      %207 = vmatpush.bf16.msra.mxu0 0
      %208 = vmatpush.bf16.msra.mxu0 0
      %209 = vmatpush.bf16.msra.mxu0 0
      %210 = vmatpush.bf16.msra.mxu0 0
      %211 = vmatpush.bf16.msra.mxu0 0
      %212 = vmatpush.bf16.msra.mxu0 0
      %213 = vmatpush.bf16.msra.mxu0 %v200
      %214 = vmatpush.bf16.msra.mxu0 %v199
      %215 = vmatmul.bf16.gmra.mxu0 %v205
      %v216 = vpop.f32.mrf.mxu0
      %v217 = vadd.f32 0.0, %v216
      %v218 = vpop.f32.mrf.mxu0
      %219 = vdwg.mxu0
      %v220 = vadd.f32 %v186, %v217
      %v221 = vxor.u32 %v220, 2147483648
      %v222 = vmul.f32 %v221, 1.442695
      %v223 = vpow.pop %v222
      %v224 = vadd.f32 %v223, 1.0
      %v225 = vrcp.pop %v224
      %v226 = vmul.f32 %v224, %v225
      %v227 = vsub.f32 1.0, %v226
      %v228 = vmul.f32 %v225, %v227
      %v229 = vadd.f32 %v225, %v228
      %vm230 = vweird.f32 %v224
      %vm231 = vweird.f32 %v225
      %vm232 = vmor %vm230, %vm231
      %v233 = vsel %vm232, %v225, %v229
      %v234 = vand.u32 2147483647, %v224
      %vm235 = vcmp.eq.f32.partialorder %v234, 8.507059e+37
      %v236 = vand.u32 %v224, 2147483648
      %v237 = vor.u32 1.1754944e-38, %v236
      %v238 = vsel %vm235, %v237, %v233
      %v239 = vmul.f32 1.0, %v238
      %v240 = vtanh.pop %v220
      %v241 = vmul.f32 %v239, %v182
      %243 = vrot.lane.b32.xlu0 %v240, 32
      %v244 = vpop.permute.xlu0 %243
      %v246 = vmul.f32 %v239, %v244
      %248 = vrot.lane.b32.xlu0 %v246, 32
      %v249 = vpop.permute.xlu0 %248
      %v251 = vadd.f32 %v241, %v249
      %v252 = vtanh.pop %v251
      %254 = vrot.lane.b32.xlu0 %v252, 32
      %v255 = vpop.permute.xlu0 %254
      %v257 = vmul.f32 %v239, %v255
      %s258 = sadd.s32 %s176, 1
      %v259 = vstv %s258
      %vm260 = vcmp.eq.s32.totalorder %v173, %v259
      %v261 = vsel %vm260, 1, 0
      %262 = vset.pattern.permute.xlu0 0
      %263 = vperm.xlu0 %262, %v261
      %v264 = vpop.permute.xlu0 %263
      %vm265 = vcmp.eq.s32.totalorder %v264, 1
      %v266 = vsel %vm265, %v257, %v183
    $region38: #{tpu_custom_call.1} parent=1 // loop_footer
      %s178 = sadd.s32 %s176, 1
    $region39: #{tpu_custom_call.1} parent=1 // loop_footer_branch
      %175 = sbr.rel target = $region35
    $region40: #{tpu_custom_call.1} parent=1 // loop_exit
      _
    %268 = vrot.lane.b32.xlu0 %v183, 64
    %v269 = vpop.permute.xlu0 %268
    %vm271 = vcmask 261120
    %272 = vst.msk [vmem:[#allocation11] sm:$0xff] %vm271, %v269
    // Predicated region
    $region41: #{tpu_custom_call.1} parent=1 // pred_check
      _
    $region42: #{tpu_custom_call.1} parent=1 // pred_check_branch
      %274 = sbr.rel (0) target = $region44
    $region43: #{tpu_custom_call.1} parent=1 // pred_region
      %276 = vsyncadd [#allocation7], 0
      %s278 = sshll.u32 [#allocation11], 4
      %s279 = int_to_ptr.vmem [resolvable:$true] %s278
      %s280 = sshll.u32 %s6, 4
      %s281 = int_to_ptr.hbm [resolvable:$true] %s280
      %283 = dma.vmem_to_hbm [thread:$0]  %s279, 128, %s281, [#allocation7]
    $region44: #{tpu_custom_call.1} parent=1 // pred_fallthru
      _
    // Predicated region
    $region45: #{tpu_custom_call.1} parent=1 // pred_check
      _
    $region46: #{tpu_custom_call.1} parent=1 // pred_check_branch
      %285 = sbr.rel (0) target = $region48
    $region47: #{tpu_custom_call.1} parent=1 // pred_region
      %287 = dma.done [#allocation7], 128
    $region48: #{tpu_custom_call.1} parent=1 // pred_fallthru
      _
    %288 = vsyncpa [#allocation6], 1
    %289 = vsyncpa [#allocation9], 1
    %290 = vsyncpa [#allocation7], 1

</llo_original>
